<compile_context>
chip_gen: v7x
topology: tpu7x:2x2x1
jax: 0.10.0
libtpu: 0.0.40
codegen_flags: <defaults>
</compile_context>

<pallas_src>
import jax
import jax.numpy as jnp
from jax.experimental import pallas as pl
from jax.experimental.pallas import tpu as pltpu

K_IN = 216     # linear3 in_features
H_RAW = 54     # linear3 out_features (logical)
H_PAD = 64     # hidden padded to a layout-friendly size (weights only)
N_OUT = 10     # linear4 out_features


def _mlp_kernel(x_ref, w3_ref, b3_ref, w4_ref, b4_ref, o_ref):
    # hidden = relu(x @ W3 + b3) -- MXU accumulates in f32, epilogue in f32
    h = jnp.dot(x_ref[...], w3_ref[...], preferred_element_type=jnp.float32)
    h = jnp.maximum(h + b3_ref[...], 0.0)
    # y = hidden @ W4 + b4       -- second matmul kept fully in f32
    y = jnp.dot(h, w4_ref[...], preferred_element_type=jnp.float32)
    o_ref[...] = (y + b4_ref[...]).astype(o_ref.dtype)


def _round_up(n, m):
    return (n + m - 1) // m * m


def model2_forward(x, w3, b3, w4, b4, *, tm=4096):
    """x: (B, 216) f32 or bf16.
    w3: (216, 64), b3: (1, 64), w4: (64, 10), b4: (1, 10)  (hidden dim already
    zero-padded 54->64 by pack_params; w4/b3/b4 stay f32)."""
    B = x.shape[0]

    # Tiny first-layer weight follows x's dtype so the MXU sees one dtype.
    if w3.dtype != x.dtype:
        w3 = w3.astype(x.dtype)

    # Row-tile: big enough to amortize per-step overhead, small enough that the
    # grid has >= 4 steps (v7x megacore) and never exceeds the batch.
    if B < 8:
        TM = B                      # block dims == full array dims -> legal
    else:
        TM = min(tm,
                 _round_up(pl.cdiv(B, 4), 8),   # keep >= 4 grid steps
                 _round_up(B, 8))                # never bigger than batch

    grid = (pl.cdiv(B, TM),)        # ragged last block handled by Pallas

    out = pl.pallas_call(
        _mlp_kernel,
        out_shape=jax.ShapeDtypeStruct((B, N_OUT), jnp.float32),
        grid_spec=pltpu.PrefetchScalarGridSpec(
            num_scalar_prefetch=0,
            grid=grid,
            in_specs=[
                # batch-tiled activation stream
                pl.BlockSpec((TM, K_IN), lambda i: (i, 0)),
                # weights / biases: constant block index -> resident in VMEM
                pl.BlockSpec((K_IN, H_PAD), lambda i: (0, 0)),
                pl.BlockSpec((1, H_PAD), lambda i: (0, 0)),
                pl.BlockSpec((H_PAD, N_OUT), lambda i: (0, 0)),
                pl.BlockSpec((1, N_OUT), lambda i: (0, 0)),
            ],
            out_specs=pl.BlockSpec((TM, N_OUT), lambda i: (i, 0)),
        ),
        compiler_params=pltpu.CompilerParams(
            dimension_semantics=("parallel",),
            vmem_limit_bytes=32 * 1024 * 1024),
    )(x, w3, b3, w4, b4)

    return out


def init_params(key):
    """Unpadded params, stored (in_features, out_features) == transpose of the
    PyTorch weight; uniform(-1/sqrt(fan_in), 1/sqrt(fan_in)) like nn.Linear."""
    k1, k2, k3, k4 = jax.random.split(key, 4)
    lim3 = 1.0 / jnp.sqrt(216.0)
    lim4 = 1.0 / jnp.sqrt(54.0)
    w3 = jax.random.uniform(k1, (K_IN, H_RAW), jnp.float32, -lim3, lim3)
    b3 = jax.random.uniform(k2, (1, H_RAW), jnp.float32, -lim3, lim3)
    w4 = jax.random.uniform(k3, (H_RAW, N_OUT), jnp.float32, -lim4, lim4)
    b4 = jax.random.uniform(k4, (1, N_OUT), jnp.float32, -lim4, lim4)
    return w3, b3, w4, b4


def pack_params(w3, b3, w4, b4):
    """One-time, free zero-padding of the hidden dim 54 -> 64 for the kernel.
    Padded hidden units produce relu(0 + 0) = 0 and feed zero rows of w4, so
    the result is bit-identical to the unpadded math."""
    w3p = jnp.zeros((K_IN, H_PAD), jnp.float32).at[:, :H_RAW].set(w3)
    b3p = jnp.zeros((1, H_PAD), jnp.float32).at[:, :H_RAW].set(b3)
    w4p = jnp.zeros((H_PAD, N_OUT), jnp.float32).at[:H_RAW, :].set(w4)
    return w3p, b3p, w4p, b4


if __name__ == "__main__":
    key = jax.random.PRNGKey(0)
    k_x, k_p, k_x2 = jax.random.split(key, 3)

    w3, b3, w4, b4 = init_params(k_p)
    packed = pack_params(w3, b3, w4, b4)

    # --- tiny batch (B < 8: single full-extent block) -----------------------
    B = 4
    x = jax.random.normal(k_x, (B, 216), jnp.float32)
    y = jax.block_until_ready(model2_forward(x, *packed))
    ref = jnp.maximum(x @ w3 + b3, 0.0) @ w4 + b4
    assert y.shape == (B, 10)
    assert jnp.allclose(y, ref, atol=1e-5, rtol=1e-5)

    # --- multi-step grid with ragged last block (no jnp.pad of x) -----------
    B2 = 300   # TM=80 -> grid of 4 steps, last block only 60 valid rows
    x2 = jax.random.normal(k_x2, (B2, 216), jnp.float32)
    y2 = jax.block_until_ready(model2_forward(x2, *packed))
    ref2 = jnp.maximum(x2 @ w3 + b3, 0.0) @ w4 + b4
    assert y2.shape == (B2, 10)
    assert jnp.allclose(y2, ref2, atol=1e-4, rtol=1e-4)

    # --- bf16 x arriving from upstream (no wrapper cast of x; w4 stays f32) -
    x2_bf16 = x2.astype(jnp.bfloat16)   # simulates an upstream bf16 producer
    y16 = jax.block_until_ready(model2_forward(x2_bf16, *packed))
    assert jnp.allclose(y16, ref2, atol=5e-2, rtol=5e-2)

    print("KERNEL_OK")
</pallas_src>

<mosaic_0001>
module attributes {stable_mosaic.version = 11 : i64} {
  func.func @_mlp_kernel(%arg0: i32, %arg1: memref<4x216xf32, #tpu.memory_space<vmem>>, %arg2: memref<216x64xf32, #tpu.memory_space<vmem>>, %arg3: memref<1x64xf32, #tpu.memory_space<vmem>>, %arg4: memref<64x10xf32, #tpu.memory_space<vmem>>, %arg5: memref<1x10xf32, #tpu.memory_space<vmem>>, %arg6: memref<4x10xf32, #tpu.memory_space<vmem>>) attributes {dimension_semantics = [#tpu.dimension_semantics<parallel>], iteration_bounds = array<i64: 1>, scalar_prefetch = 0 : i64, scratch_operands = 0 : i64, tpu.core_type = #tpu.core_type<tc>, window_params = [{transform_indices = @transform_0, window_bounds = array<i64: 4, 216>}, {pipeline_mode = #tpu.pipeline_mode<synchronous>, transform_indices = @transform_1, window_bounds = array<i64: 216, 64>}, {pipeline_mode = #tpu.pipeline_mode<synchronous>, transform_indices = @transform_2, window_bounds = array<i64: 1, 64>}, {pipeline_mode = #tpu.pipeline_mode<synchronous>, transform_indices = @transform_3, window_bounds = array<i64: 64, 10>}, {pipeline_mode = #tpu.pipeline_mode<synchronous>, transform_indices = @transform_4, window_bounds = array<i64: 1, 10>}, {transform_indices = @transform_5, window_bounds = array<i64: 4, 10>}]} {
    %c0 = arith.constant 0 : index
    %c0_0 = arith.constant 0 : index
    %0 = vector.load %arg1[%c0, %c0_0] : memref<4x216xf32, #tpu.memory_space<vmem>>, vector<4x216xf32>
    %c0_1 = arith.constant 0 : index
    %c0_2 = arith.constant 0 : index
    %1 = vector.load %arg2[%c0_1, %c0_2] : memref<216x64xf32, #tpu.memory_space<vmem>>, vector<216x64xf32>
    %cst = arith.constant dense<0.000000e+00> : vector<4x64xf32>
    %2 = tpu.matmul %0, %1, %cst {dimension_numbers = #tpu.dot_dimension_numbers<[1], [0], [0], [1], [0, 0, 1, 1], [], []>} : vector<4x216xf32>, vector<216x64xf32>, vector<4x64xf32> -> vector<4x64xf32>
    %c0_3 = arith.constant 0 : index
    %c0_4 = arith.constant 0 : index
    %3 = vector.load %arg3[%c0_3, %c0_4] : memref<1x64xf32, #tpu.memory_space<vmem>>, vector<1x64xf32>
    %4 = vector.broadcast %3 : vector<1x64xf32> to vector<4x64xf32>
    %5 = arith.addf %2, %4 : vector<4x64xf32>
    %cst_5 = arith.constant 0.000000e+00 : f32
    %6 = vector.broadcast %cst_5 : f32 to vector<4x64xf32>
    %7 = arith.maximumf %5, %6 : vector<4x64xf32>
    %c0_6 = arith.constant 0 : index
    %c0_7 = arith.constant 0 : index
    %8 = vector.load %arg4[%c0_6, %c0_7] : memref<64x10xf32, #tpu.memory_space<vmem>>, vector<64x10xf32>
    %cst_8 = arith.constant dense<0.000000e+00> : vector<4x10xf32>
    %9 = tpu.matmul %7, %8, %cst_8 {dimension_numbers = #tpu.dot_dimension_numbers<[1], [0], [0], [1], [0, 0, 1, 1], [], []>} : vector<4x64xf32>, vector<64x10xf32>, vector<4x10xf32> -> vector<4x10xf32>
    %c0_9 = arith.constant 0 : index
    %c0_10 = arith.constant 0 : index
    %10 = vector.load %arg5[%c0_9, %c0_10] : memref<1x10xf32, #tpu.memory_space<vmem>>, vector<1x10xf32>
    %11 = vector.broadcast %10 : vector<1x10xf32> to vector<4x10xf32>
    %12 = arith.addf %9, %11 : vector<4x10xf32>
    %c0_11 = arith.constant 0 : index
    %c0_12 = arith.constant 0 : index
    %13 = vector.load %arg6[%c0_11, %c0_12] : memref<4x10xf32, #tpu.memory_space<vmem>>, vector<4x10xf32>
    tpu.vector_store %arg6[%c0_11, %c0_12], %12 {strides = array<i32>} : memref<4x10xf32, #tpu.memory_space<vmem>>, vector<4x10xf32>,
    return
  }
  func.func @transform_0(%arg0: i32) -> (i32, i32) {
    %c0_i32 = arith.constant 0 : i32
    %c0_i32_0 = arith.constant 0 : i32
    return %arg0, %c0_i32 : i32, i32
  }
  func.func @transform_1(%arg0: i32) -> (i32, i32) {
    %c0_i32 = arith.constant 0 : i32
    %c0_i32_0 = arith.constant 0 : i32
    %c0_i32_1 = arith.constant 0 : i32
    return %c0_i32, %c0_i32_0 : i32, i32
  }
  func.func @transform_2(%arg0: i32) -> (i32, i32) {
    %c0_i32 = arith.constant 0 : i32
    %c0_i32_0 = arith.constant 0 : i32
    %c0_i32_1 = arith.constant 0 : i32
    return %c0_i32, %c0_i32_0 : i32, i32
  }
  func.func @transform_3(%arg0: i32) -> (i32, i32) {
    %c0_i32 = arith.constant 0 : i32
    %c0_i32_0 = arith.constant 0 : i32
    %c0_i32_1 = arith.constant 0 : i32
    return %c0_i32, %c0_i32_0 : i32, i32
  }
  func.func @transform_4(%arg0: i32) -> (i32, i32) {
    %c0_i32 = arith.constant 0 : i32
    %c0_i32_0 = arith.constant 0 : i32
    %c0_i32_1 = arith.constant 0 : i32
    return %c0_i32, %c0_i32_0 : i32, i32
  }
  func.func @transform_5(%arg0: i32) -> (i32, i32) {
    %c0_i32 = arith.constant 0 : i32
    %c0_i32_0 = arith.constant 0 : i32
    return %arg0, %c0_i32 : i32, i32
  }
}

</mosaic_0001>

<llo_original>
// kernel: tpu_custom_call.1
$region0: #{tpu_custom_call.1}
  #allocation0 [shape = 'u32[]', space=smem, size = 0x4, offset = 0x4, fixed_abs, tag = 'smem constant byte address 0x4 - core index']
  #allocation1 [shape = 'u32[144,128]{1,0:T(1,128)}', space=vmem, size = 0x12000, scoped, tag = 'internal scratch']
  %s0 = inlined_call_operand.vmem [shape: f32[4,216], index: 0, kind: input, shape index: {}]
  %s1 = inlined_call_operand.vmem [shape: f32[216,64], index: 1, kind: input, shape index: {}]
  %s2 = inlined_call_operand.vmem [shape: f32[1,64], index: 2, kind: input, shape index: {}]
  %s3 = inlined_call_operand.vmem [shape: f32[64,10], index: 3, kind: input, shape index: {}]
  %s4 = inlined_call_operand.vmem [shape: f32[1,10], index: 4, kind: input, shape index: {}]
  %s5 = inlined_call_operand.hbm [shape: f32[4,10], index: 5, kind: output, shape index: {}]
  %s6 = sld [smem:[#allocation0]]
  $region30: #{tpu_custom_call.1} parent=0
    _
  %s8 = ssub.s32 1, %s6
  %s9 = scalar_select 0, %s8, %s6
  $region1: #{tpu_custom_call.1} parent=0
    #allocation2 [shape = 'u8[2048]{0}', space=vmem, size = 0x800, scoped, tag = 'output window, operand 0, single buffered']
    #allocation3 [shape = 's32[1]{0}', space=sflag, size = 0x4, scoped, tag = 'scoped memory for tpu_custom_call.1']
    %10 = vsyncpa [#allocation3], 0
    // Predicated region
    $region2: #{tpu_custom_call.1} parent=1 // pred_check
      _
    $region3: #{tpu_custom_call.1} parent=1 // pred_check_branch
      %12 = sbr.rel (0) target = $region5
    $region4: #{tpu_custom_call.1} parent=1 // pred_region
      _
    $region5: #{tpu_custom_call.1} parent=1 // pred_fallthru
      _
    // Predicated region
    $region6: #{tpu_custom_call.1} parent=1 // pred_check
      _
    $region7: #{tpu_custom_call.1} parent=1 // pred_check_branch
      %14 = sbr.rel (0) target = $region9
    $region8: #{tpu_custom_call.1} parent=1 // pred_region
      _
    $region9: #{tpu_custom_call.1} parent=1 // pred_fallthru
      _
    // Predicated region
    $region10: #{tpu_custom_call.1} parent=1 // pred_check
      _
    $region11: #{tpu_custom_call.1} parent=1 // pred_check_branch
      %16 = sbr.rel (0) target = $region13
    $region12: #{tpu_custom_call.1} parent=1 // pred_region
      _
    $region13: #{tpu_custom_call.1} parent=1 // pred_fallthru
      _
    // Predicated region
    $region14: #{tpu_custom_call.1} parent=1 // pred_check
      _
    $region15: #{tpu_custom_call.1} parent=1 // pred_check_branch
      %18 = sbr.rel (0) target = $region17
    $region16: #{tpu_custom_call.1} parent=1 // pred_region
      _
    $region17: #{tpu_custom_call.1} parent=1 // pred_fallthru
      _
    // Predicated region
    $region18: #{tpu_custom_call.1} parent=1 // pred_check
      _
    $region19: #{tpu_custom_call.1} parent=1 // pred_check_branch
      %20 = sbr.rel (0) target = $region21
    $region20: #{tpu_custom_call.1} parent=1 // pred_region
      _
    $region21: #{tpu_custom_call.1} parent=1 // pred_fallthru
      _
    %v21 = vld [vmem:[%s0] sm:$0xff]
    %v22 = vld [vmem:[%s1] sm:$0xff]
    %v23 = vld [vmem:[%s1 + $0x8] sm:$0xff]
    %v24 = vld [vmem:[%s1 + $0x10] sm:$0xff]
    %v25 = vld [vmem:[%s1 + $0x18] sm:$0xff]
    %v26 = vld [vmem:[%s1 + $0x20] sm:$0xff]
    %v27 = vld [vmem:[%s1 + $0x28] sm:$0xff]
    %v28 = vld [vmem:[%s1 + $0x30] sm:$0xff]
    %v29 = vld [vmem:[%s1 + $0x38] sm:$0xff]
    %v30 = vld [vmem:[%s1 + $0x40] sm:$0xff]
    %v31 = vld [vmem:[%s1 + $0x48] sm:$0xff]
    %v32 = vld [vmem:[%s1 + $0x50] sm:$0xff]
    %v33 = vld [vmem:[%s1 + $0x58] sm:$0xff]
    %v34 = vld [vmem:[%s1 + $0x60] sm:$0xff]
    %v35 = vld [vmem:[%s1 + $0x68] sm:$0xff]
    %v36 = vld [vmem:[%s1 + $0x70] sm:$0xff]
    %v37 = vld [vmem:[%s1 + $0x78] sm:$0xff]
    %v38 = vld [vmem:[%s1 + $0x80] sm:$0xff]
    %v39 = vld [vmem:[%s1 + $0x88] sm:$0xff]
    %v40 = vld [vmem:[%s1 + $0x90] sm:$0xff]
    %v41 = vld [vmem:[%s1 + $0x98] sm:$0xff]
    %v42 = vld [vmem:[%s1 + $0xa0] sm:$0xff]
    %v43 = vld [vmem:[%s1 + $0xa8] sm:$0xff]
    %v44 = vld [vmem:[%s1 + $0xb0] sm:$0xff]
    %v45 = vld [vmem:[%s1 + $0xb8] sm:$0xff]
    %v46 = vld [vmem:[%s1 + $0xc0] sm:$0xff]
    %v47 = vld [vmem:[%s1 + $0xc8] sm:$0xff]
    %v48 = vld [vmem:[%s1 + $0xd0] sm:$0xff]
    %v49 = vld [vmem:[%s2] sm:$0x1]
    %v51 = vlaneseq
    %v52 = vshrl.u32 %v51, 7
    %v53 = vsub.s32 0, %v52
    %v54 = vrot.slane %v49, %v53
    %v57 = vcombine.high %v21, %v21
    %vm58 = vcmask 719872
    %v59 = vsel %vm58, %v57, 0
    %61 = vmatprep.subr.mxu0 0.0
    %62 = vmatpush1.msra.mxu0 %v22
    %63 = vmatprep.subr.mxu0 0.0
    %64 = vmatpush1.msra.mxu0 %v23
    %65 = vmatprep.subr.mxu0 0.0
    %66 = vmatpush1.msra.mxu0 %v24
    %67 = vmatprep.subr.mxu0 0.0
    %68 = vmatpush1.msra.mxu0 %v25
    %69 = vmatprep.subr.mxu0 0.0
    %70 = vmatpush1.msra.mxu0 %v26
    %71 = vmatprep.subr.mxu0 0.0
    %72 = vmatpush1.msra.mxu0 %v27
    %73 = vmatprep.subr.mxu0 0.0
    %74 = vmatpush1.msra.mxu0 %v28
    %75 = vmatprep.subr.mxu0 0.0
    %76 = vmatpush1.msra.mxu0 %v29
    %77 = vmatprep.subr.mxu0 0.0
    %78 = vmatpush1.msra.mxu0 %v30
    %79 = vmatprep.subr.mxu0 0.0
    %80 = vmatpush1.msra.mxu0 %v31
    %81 = vmatprep.subr.mxu0 0.0
    %82 = vmatpush1.msra.mxu0 %v32
    %83 = vmatprep.subr.mxu0 0.0
    %84 = vmatpush1.msra.mxu0 %v33
    %85 = vmatprep.subr.mxu0 0.0
    %86 = vmatpush1.msra.mxu0 %v34
    %87 = vmatprep.subr.mxu0 0.0
    %88 = vmatpush1.msra.mxu0 %v35
    %89 = vmatprep.subr.mxu0 0.0
    %90 = vmatpush1.msra.mxu0 %v36
    %91 = vmatprep.subr.mxu0 0.0
    %92 = vmatpush1.msra.mxu0 %v37
    %93 = vmatprep.subr.mxu0 0.0
    %94 = vmatpush1.msra.mxu0 %v38
    %95 = vmatprep.subr.mxu0 0.0
    %96 = vmatpush1.msra.mxu0 %v39
    %97 = vmatprep.subr.mxu0 0.0
    %98 = vmatpush1.msra.mxu0 %v40
    %99 = vmatprep.subr.mxu0 0.0
    %100 = vmatpush1.msra.mxu0 %v41
    %101 = vmatprep.subr.mxu0 0.0
    %102 = vmatpush1.msra.mxu0 %v42
    %103 = vmatprep.subr.mxu0 0.0
    %104 = vmatpush1.msra.mxu0 %v43
    %105 = vmatprep.subr.mxu0 0.0
    %106 = vmatpush1.msra.mxu0 %v44
    %107 = vmatprep.subr.mxu0 0.0
    %108 = vmatpush1.msra.mxu0 %v45
    %109 = vmatprep.subr.mxu0 0.0
    %110 = vmatpush1.msra.mxu0 %v46
    %111 = vmatprep.subr.mxu0 0.0
    %112 = vmatpush1.msra.mxu0 %v47
    %113 = vmatprep.subr.mxu0 0.0
    %114 = vmatpush1.msra.mxu0 %v48
    %115 = vmatprep.subr.mxu0 0.0
    %116 = vmatpush1.msra.mxu0 0.0
    %117 = vmatprep.subr.mxu0 0.0
    %118 = vmatpush1.msra.mxu0 0.0
    %119 = vmatprep.subr.mxu0 0.0
    %120 = vmatpush1.msra.mxu0 0.0
    %121 = vmatprep.subr.mxu0 0.0
    %122 = vmatpush1.msra.mxu0 0.0
    %123 = vmatprep.subr.mxu0 0.0
    %124 = vmatpush1.msra.mxu0 0.0
    %125 = vmatprep.mubr.f32.mxu0 %v59
    %126 = vmatmul.mubr.f32.gmra.mrb[0].mxu0 %v21
    %v127 = vpop.f32.mrb[0].mxu0
    %v128 = vadd.f32 %v54, %v127
    %v129 = vpop.f32.mrb[0].mxu0
    %130 = vdwg.mxu0
    %v131 = vmax.f32 %v128, 0.0
    %v132 = vld [vmem:[%s3] sm:$0xff]
    %v133 = vld [vmem:[%s3 + $0x8] sm:$0xff]
    %v134 = vld [vmem:[%s3 + $0x10] sm:$0xff]
    %v135 = vld [vmem:[%s3 + $0x18] sm:$0xff]
    %v136 = vld [vmem:[%s3 + $0x20] sm:$0xff]
    %v137 = vld [vmem:[%s3 + $0x28] sm:$0xff]
    %v138 = vld [vmem:[%s3 + $0x30] sm:$0xff]
    %v139 = vld [vmem:[%s3 + $0x38] sm:$0xff]
    %v140 = vld [vmem:[%s4] sm:$0x1]
    %v142 = vlaneseq
    %v143 = vshrl.u32 %v142, 7
    %v144 = vsub.s32 0, %v143
    %v145 = vrot.slane %v140, %v144
    %vm147 = vcmask 523264
    %v149 = vsel %vm147, %v131, 0
    %151 = vmatprep.subr.mxu0 0.0
    %152 = vmatpush1.msra.mxu0 %v132
    %153 = vmatprep.subr.mxu0 0.0
    %154 = vmatpush1.msra.mxu0 %v133
    %155 = vmatprep.subr.mxu0 0.0
    %156 = vmatpush1.msra.mxu0 %v134
    %157 = vmatprep.subr.mxu0 0.0
    %158 = vmatpush1.msra.mxu0 %v135
    %159 = vmatprep.subr.mxu0 0.0
    %160 = vmatpush1.msra.mxu0 %v136
    %161 = vmatprep.subr.mxu0 0.0
    %162 = vmatpush1.msra.mxu0 %v137
    %163 = vmatprep.subr.mxu0 0.0
    %164 = vmatpush1.msra.mxu0 %v138
    %165 = vmatprep.subr.mxu0 0.0
    %166 = vmatpush1.msra.mxu0 %v139
    %167 = vmatprep.subr.mxu0 0.0
    %168 = vmatpush1.msra.mxu0 0.0
    %169 = vmatprep.subr.mxu0 0.0
    %170 = vmatpush1.msra.mxu0 0.0
    %171 = vmatprep.subr.mxu0 0.0
    %172 = vmatpush1.msra.mxu0 0.0
    %173 = vmatprep.subr.mxu0 0.0
    %174 = vmatpush1.msra.mxu0 0.0
    %175 = vmatprep.subr.mxu0 0.0
    %176 = vmatpush1.msra.mxu0 0.0
    %177 = vmatprep.subr.mxu0 0.0
    %178 = vmatpush1.msra.mxu0 0.0
    %179 = vmatprep.subr.mxu0 0.0
    %180 = vmatpush1.msra.mxu0 0.0
    %181 = vmatprep.subr.mxu0 0.0
    %182 = vmatpush1.msra.mxu0 0.0
    %183 = vmatprep.subr.mxu0 0.0
    %184 = vmatpush1.msra.mxu0 0.0
    %185 = vmatprep.subr.mxu0 0.0
    %186 = vmatpush1.msra.mxu0 0.0
    %187 = vmatprep.subr.mxu0 0.0
    %188 = vmatpush1.msra.mxu0 0.0
    %189 = vmatprep.subr.mxu0 0.0
    %190 = vmatpush1.msra.mxu0 0.0
    %191 = vmatprep.subr.mxu0 0.0
    %192 = vmatpush1.msra.mxu0 0.0
    %193 = vmatprep.subr.mxu0 0.0
    %194 = vmatpush1.msra.mxu0 0.0
    %195 = vmatprep.subr.mxu0 0.0
    %196 = vmatpush1.msra.mxu0 0.0
    %197 = vmatprep.subr.mxu0 0.0
    %198 = vmatpush1.msra.mxu0 0.0
    %199 = vmatprep.subr.mxu0 0.0
    %200 = vmatpush1.msra.mxu0 0.0
    %201 = vmatprep.subr.mxu0 0.0
    %202 = vmatpush1.msra.mxu0 0.0
    %203 = vmatprep.subr.mxu0 0.0
    %204 = vmatpush1.msra.mxu0 0.0
    %205 = vmatprep.subr.mxu0 0.0
    %206 = vmatpush1.msra.mxu0 0.0
    %207 = vmatprep.subr.mxu0 0.0
    %208 = vmatpush1.msra.mxu0 0.0
    %209 = vmatprep.subr.mxu0 0.0
    %210 = vmatpush1.msra.mxu0 0.0
    %211 = vmatprep.subr.mxu0 0.0
    %212 = vmatpush1.msra.mxu0 0.0
    %213 = vmatprep.subr.mxu0 0.0
    %214 = vmatpush1.msra.mxu0 0.0
    %215 = vmatprep.mubr.f32.mxu0 0.0
    %216 = vmatmul.mubr.f32.gmra.mrb[0].mxu0 %v149
    %v217 = vpop.f32.mrb[0].mxu0
    %v218 = vadd.f32 %v145, %v217
    %v219 = vpop.f32.mrb[0].mxu0
    %220 = vdwg.mxu0
    %vm221 = vcmask 76800
    %222 = vst.msk [vmem:[#allocation2] sm:$0xf] %vm221, %v218
    // Predicated region
    $region22: #{tpu_custom_call.1} parent=1 // pred_check
      _
    $region23: #{tpu_custom_call.1} parent=1 // pred_check_branch
      %224 = sbr.rel (0) target = $region25
    $region24: #{tpu_custom_call.1} parent=1 // pred_region
      %s226 = ssub.s32 64, 64
      %227 = vsyncadd [#allocation3], %s226
      %s229 = sshll.u32 [#allocation2], 4
      %s230 = int_to_ptr.vmem [resolvable:$true] %s229
      %232 = dma.vmem_to_hbm [thread:$0]  %s230, 64, %s5, [#allocation3]
    $region25: #{tpu_custom_call.1} parent=1 // pred_fallthru
      _
    // Predicated region
    $region26: #{tpu_custom_call.1} parent=1 // pred_check
      _
    $region27: #{tpu_custom_call.1} parent=1 // pred_check_branch
      %234 = sbr.rel (0) target = $region29
    $region28: #{tpu_custom_call.1} parent=1 // pred_region
      %235 = dma.done [#allocation3], 64
    $region29: #{tpu_custom_call.1} parent=1 // pred_fallthru
      _
    %236 = vsyncpa [#allocation3], 1

</llo_original>
